<compile_context>
chip_gen: v7x
topology: tpu7x:2x2x1
jax: 0.10.0
libtpu: 0.0.40
codegen_flags: <defaults>
</compile_context>

<pallas_src>
import functools
from typing import NamedTuple

import jax
import jax.numpy as jnp
from jax.experimental import pallas as pl
from jax.experimental.pallas import tpu as pltpu

_LANE = 128      # lane width / feature padding granularity (hidden & action dims)
_SUBLANE = 8     # f32 sublane granularity for the batch tile
_MAX_TILE = 1024  # VMEM-friendly upper bound on the batch tile for this net


def _round_up(x, m):
    return (x + m - 1) // m * m


def _num_tensorcores():
    """Best-effort TensorCore count per device (v7x / megacore v4/v5p -> 2)."""
    try:
        kind = jax.devices()[0].device_kind.lower()
    except Exception:
        return 1
    if ("v7" in kind) or ("v4" in kind) or ("v5p" in kind):
        return 2
    return 1


def _choose_batch_tile(batch, num_cores):
    """Generation-aware batch tile.

    Single-TC chips (v5e/v6e): largest tile -> grid == 1 whenever possible (each grid
    step costs ~0.35us and there is nothing to overlap for this tiny net).
    Dual-TC chips (v7x, megacore): >= 2 steps per core so both cores get work and each
    can still pipeline its x-tile DMA.
    """
    if num_cores <= 1:
        tile = _round_up(batch, _SUBLANE)
    else:
        target_steps = 2 * num_cores
        tile = _round_up(pl.cdiv(batch, target_steps), _SUBLANE)
    return int(max(_SUBLANE, min(_MAX_TILE, tile)))


def _vmem_limit_bytes(footprint_bytes):
    """Footprint + headroom, capped at 75% of physical VMEM (never the full 64 MiB of a v7x core)."""
    try:
        phys = int(pltpu.get_tpu_info().vmem_capacity_bytes)
    except Exception:
        phys = 64 * 1024 * 1024  # most conservative (v7x per-core) assumption
    cap = (phys * 3) // 4
    want = 2 * int(footprint_bytes) + (8 << 20)  # 2x headroom + Mosaic internal scratch
    return int(min(cap, max(want, 32 << 20)))


class QNetParams(NamedTuple):
    """Pre-padded / pre-cast parameters (build once with prepare_qnetwork_params).

    weights: tuple of (in_pad, out_pad) arrays in weight_dtype (x @ W layout,
             transposed relative to nn.Linear).
    biases:  tuple of (1, out_pad) float32 arrays.
    dims:    true feature dims (state, h1, ..., action) -- static metadata.
    pdims:   padded feature dims (state dim kept unpadded) -- static metadata.
    """
    weights: tuple
    biases: tuple
    dims: tuple
    pdims: tuple


def prepare_qnetwork_params(params, weight_dtype=jnp.bfloat16):
    """Pad hidden/action dims to 128 lanes and cast weights once (cache the result)."""
    dims = [params[0][0].shape[0]] + [w.shape[1] for (w, _) in params]
    # State dim stays at its true size (kernel K is padded internally by Mosaic);
    # all output feature dims are padded to lane-dense multiples of 128.
    pdims = [dims[0]] + [max(_LANE, _round_up(d, _LANE)) for d in dims[1:]]

    weights, biases = [], []
    for li, (w, b) in enumerate(params):
        fin, fout = w.shape
        pin, pout = pdims[li], pdims[li + 1]
        wp = jnp.zeros((pin, pout), weight_dtype).at[:fin, :fout].set(
            w.astype(weight_dtype))
        bp = jnp.zeros((1, pout), jnp.float32).at[:, :fout].set(
            jnp.reshape(b, (1, -1)).astype(jnp.float32))
        weights.append(wp)
        biases.append(bp)
    return QNetParams(tuple(weights), tuple(biases), tuple(dims), tuple(pdims))


def _qnet_kernel(*refs, num_linear):
    """Fused MLP forward on one batch tile.

    refs = (x_ref, w0_ref, b0_ref, w1_ref, b1_ref, ..., out_ref)
    Weights arrive in their native (possibly bf16) dtype; accumulation is f32 on the
    MXU; bias add / ReLU run in f32 on the VPU.
    """
    x_ref = refs[0]
    out_ref = refs[-1]
    param_refs = refs[1:-1]
    assert len(param_refs) == 2 * num_linear

    x = x_ref[...].astype(jnp.float32)
    for i in range(num_linear):
        w = param_refs[2 * i][...]          # (in_pad, out_pad), native dtype
        b = param_refs[2 * i + 1][...]      # (1, out_pad), f32
        x = jnp.dot(x.astype(w.dtype), w, preferred_element_type=jnp.float32)
        x = x + b.astype(jnp.float32)
        if i < num_linear - 1:              # ReLU on all but the output layer
            x = jnp.maximum(x, 0.0)
    out_ref[...] = x.astype(out_ref.dtype)


def qnetwork_forward(state, prepared, *, batch_tile=None, return_padded=False):
    """QNetwork forward pass as a single fused Pallas kernel.

    state:    (B, state_size) float32
    prepared: QNetParams from prepare_qnetwork_params (padded/cast once, reused).
    """
    B, state_size = state.shape
    assert state_size == prepared.dims[0], "state dim mismatch with prepared params"
    num_linear = len(prepared.weights)
    pdims = prepared.pdims
    action_size = prepared.dims[-1]

    num_cores = _num_tensorcores()
    if batch_tile is None:
        batch_tile = _choose_batch_tile(B, num_cores)
    batch_tile = int(max(_SUBLANE, _round_up(int(batch_tile), _SUBLANE)))
    grid = (pl.cdiv(B, batch_tile),)   # partial last block is masked by Pallas

    # --- VMEM footprint / limit, single- vs. double-buffered weights ---
    w_bytes = sum(int(w.size) * w.dtype.itemsize for w in prepared.weights)
    b_bytes = sum(int(b.size) * b.dtype.itemsize for b in prepared.biases)
    # Single-buffer the constant weight blocks only when double-buffering them would
    # meaningfully eat VMEM (large hidden sizes); at toy sizes use the default path.
    single_buffer = (w_bytes + b_bytes) > (2 << 20)
    wb_buf = 1 if single_buffer else 2
    act_cols = max(pdims[1:])
    footprint = (
        wb_buf * (w_bytes + b_bytes)
        + 2 * batch_tile * state_size * 4        # x tile, double-buffered
        + 2 * batch_tile * pdims[-1] * 4         # out tile, double-buffered
        + 3 * batch_tile * act_cols * 4          # layer temporaries
    )
    vmem_limit = _vmem_limit_bytes(footprint)

    # --- advisory cost estimate: bytes actually moved (padded weights, true x/out) ---
    flops = 2 * B * sum(pdims[i] * pdims[i + 1] for i in range(num_linear))
    bytes_accessed = (
        B * state_size * 4 + w_bytes + b_bytes + B * pdims[-1] * 4
    )

    kernel = functools.partial(_qnet_kernel, num_linear=num_linear)

    def _build(param_pipeline_mode):
        in_specs = [pl.BlockSpec((batch_tile, state_size), lambda i: (i, 0))]
        for li in range(num_linear):
            w, b = prepared.weights[li], prepared.biases[li]
            if param_pipeline_mode is None:
                in_specs.append(pl.BlockSpec(w.shape, lambda i: (0, 0)))
                in_specs.append(pl.BlockSpec(b.shape, lambda i: (0, 0)))
            else:
                in_specs.append(pl.BlockSpec(w.shape, lambda i: (0, 0),
                                             pipeline_mode=param_pipeline_mode))
                in_specs.append(pl.BlockSpec(b.shape, lambda i: (0, 0),
                                             pipeline_mode=param_pipeline_mode))
        return pl.pallas_call(
            kernel,
            out_shape=jax.ShapeDtypeStruct((B, pdims[-1]), jnp.float32),
            grid_spec=pltpu.PrefetchScalarGridSpec(
                num_scalar_prefetch=0,
                grid=grid,
                in_specs=in_specs,
                out_specs=pl.BlockSpec((batch_tile, pdims[-1]), lambda i: (i, 0)),
            ),
            compiler_params=pltpu.CompilerParams(
                dimension_semantics=("parallel",),
                vmem_limit_bytes=vmem_limit,
            ),
            cost_estimate=pl.CostEstimate(
                flops=flops, transcendentals=0, bytes_accessed=bytes_accessed),
        )

    flat = (state.astype(jnp.float32),) + tuple(
        a for li in range(num_linear)
        for a in (prepared.weights[li], prepared.biases[li]))

    if single_buffer:
        try:
            out_padded = _build(pl.Buffered(1))(*flat)
        except Exception:
            # Fallback if this JAX build rejects pipeline_mode / Buffered(1); only a
            # VMEM-footprint concern, never a correctness one.
            out_padded = _build(None)(*flat)
    else:
        out_padded = _build(None)(*flat)

    if return_padded:
        return out_padded                       # (B, out_pad): first action_size lanes valid
    return out_padded[:, :action_size]


def init_qnetwork_params(key, state_size, action_size, hidden_units):
    """Deterministic init mirroring nn.Linear's default U(-1/sqrt(fan_in), 1/sqrt(fan_in))."""
    dims = [state_size] + list(hidden_units) + [action_size]
    params = []
    for i in range(len(dims) - 1):
        fan_in, fan_out = dims[i], dims[i + 1]
        key, kw, kb = jax.random.split(key, 3)
        bound = 1.0 / jnp.sqrt(jnp.float32(fan_in))
        w = jax.random.uniform(kw, (fan_in, fan_out), jnp.float32, -bound, bound)
        b = jax.random.uniform(kb, (fan_out,), jnp.float32, -bound, bound)
        params.append((w, b))
    return params


def qnetwork_reference(state, params):
    """Pure-JAX f32 reference of the PyTorch forward pass."""
    x = state
    for i, (w, b) in enumerate(params):
        x = x @ w + b
        if i < len(params) - 1:
            x = jnp.maximum(x, 0.0)
    return x


if __name__ == "__main__":
    # Shapes consistent with the module: state_size=8, hidden_units=[32, 32], action_size=4.
    state_size, action_size, hidden_units = 8, 4, [32, 32]

    key = jax.random.PRNGKey(0)
    key, kparams, ks1, ks2, ks3 = jax.random.split(key, 5)
    params = init_qnetwork_params(kparams, state_size, action_size, hidden_units)

    # Pad/cast the parameters ONCE; reuse across all forward calls.
    prep_bf16 = prepare_qnetwork_params(params)                       # bf16 weights (default)
    prep_f32 = prepare_qnetwork_params(params, weight_dtype=jnp.float32)  # exact path

    # Small batch (grid == 1 on single-TC chips).
    state = jax.random.normal(ks1, (8, state_size), jnp.float32)
    ref = qnetwork_reference(state, params)
    out = jax.block_until_ready(qnetwork_forward(state, prep_bf16))
    assert out.shape == (8, action_size)
    assert jnp.allclose(out, ref, atol=3e-2, rtol=3e-2), "bf16-weight path mismatch"

    out_f32 = jax.block_until_ready(qnetwork_forward(state, prep_f32))
    assert jnp.allclose(out_f32, ref, atol=1e-5, rtol=1e-5), "f32 path mismatch"

    # Batch not a multiple of the tile: exercises Pallas masking of the partial block
    # (no wrapper-side batch padding anymore).
    state2 = jax.random.normal(ks2, (20, state_size), jnp.float32)
    out2 = jax.block_until_ready(qnetwork_forward(state2, prep_bf16))
    ref2 = qnetwork_reference(state2, params)
    assert out2.shape == (20, action_size)
    assert jnp.allclose(out2, ref2, atol=3e-2, rtol=3e-2), "partial-block path mismatch"

    # Forced multi-step grid (small tile) with a ragged last block, exact f32 path.
    state3 = jax.random.normal(ks3, (40, state_size), jnp.float32)
    out3 = jax.block_until_ready(qnetwork_forward(state3, prep_f32, batch_tile=16))
    ref3 = qnetwork_reference(state3, params)
    assert jnp.allclose(out3, ref3, atol=1e-5, rtol=1e-5), "multi-step grid mismatch"

    print("KERNEL_OK")
</pallas_src>

<mosaic_0001>
module attributes {stable_mosaic.version = 11 : i64} {
  func.func @_qnet_kernel(%arg0: i32, %arg1: memref<8x8xf32, #tpu.memory_space<vmem>>, %arg2: memref<8x128xbf16, #tpu.memory_space<vmem>>, %arg3: memref<1x128xf32, #tpu.memory_space<vmem>>, %arg4: memref<128x128xbf16, #tpu.memory_space<vmem>>, %arg5: memref<1x128xf32, #tpu.memory_space<vmem>>, %arg6: memref<128x128xbf16, #tpu.memory_space<vmem>>, %arg7: memref<1x128xf32, #tpu.memory_space<vmem>>, %arg8: memref<8x128xf32, #tpu.memory_space<vmem>>) attributes {dimension_semantics = [#tpu.dimension_semantics<parallel>], iteration_bounds = array<i64: 1>, scalar_prefetch = 0 : i64, scratch_operands = 0 : i64, tpu.core_type = #tpu.core_type<tc>, window_params = [{transform_indices = @transform_0, window_bounds = array<i64: 8, 8>}, {pipeline_mode = #tpu.pipeline_mode<synchronous>, transform_indices = @transform_1, window_bounds = array<i64: 8, 128>}, {pipeline_mode = #tpu.pipeline_mode<synchronous>, transform_indices = @transform_2, window_bounds = array<i64: 1, 128>}, {pipeline_mode = #tpu.pipeline_mode<synchronous>, transform_indices = @transform_3, window_bounds = array<i64: 128, 128>}, {pipeline_mode = #tpu.pipeline_mode<synchronous>, transform_indices = @transform_4, window_bounds = array<i64: 1, 128>}, {pipeline_mode = #tpu.pipeline_mode<synchronous>, transform_indices = @transform_5, window_bounds = array<i64: 128, 128>}, {pipeline_mode = #tpu.pipeline_mode<synchronous>, transform_indices = @transform_6, window_bounds = array<i64: 1, 128>}, {transform_indices = @transform_7, window_bounds = array<i64: 8, 128>}]} {
    %c0 = arith.constant 0 : index
    %c0_0 = arith.constant 0 : index
    %0 = vector.load %arg1[%c0, %c0_0] : memref<8x8xf32, #tpu.memory_space<vmem>>, vector<8x8xf32>
    %c0_1 = arith.constant 0 : index
    %c0_2 = arith.constant 0 : index
    %1 = vector.load %arg2[%c0_1, %c0_2] : memref<8x128xbf16, #tpu.memory_space<vmem>>, vector<8x128xbf16>
    %c0_3 = arith.constant 0 : index
    %c0_4 = arith.constant 0 : index
    %2 = vector.load %arg3[%c0_3, %c0_4] : memref<1x128xf32, #tpu.memory_space<vmem>>, vector<1x128xf32>
    %3 = arith.truncf %0 : vector<8x8xf32> to vector<8x8xbf16>
    %cst = arith.constant dense<0.000000e+00> : vector<8x128xf32>
    %4 = tpu.matmul %3, %1, %cst {dimension_numbers = #tpu.dot_dimension_numbers<[1], [0], [0], [1], [0, 0, 1, 1], [], []>} : vector<8x8xbf16>, vector<8x128xbf16>, vector<8x128xf32> -> vector<8x128xf32>
    %5 = vector.broadcast %2 : vector<1x128xf32> to vector<8x128xf32>
    %6 = arith.addf %4, %5 : vector<8x128xf32>
    %cst_5 = arith.constant 0.000000e+00 : f32
    %7 = vector.broadcast %cst_5 : f32 to vector<8x128xf32>
    %8 = arith.maximumf %6, %7 : vector<8x128xf32>
    %c0_6 = arith.constant 0 : index
    %c0_7 = arith.constant 0 : index
    %9 = vector.load %arg4[%c0_6, %c0_7] : memref<128x128xbf16, #tpu.memory_space<vmem>>, vector<128x128xbf16>
    %c0_8 = arith.constant 0 : index
    %c0_9 = arith.constant 0 : index
    %10 = vector.load %arg5[%c0_8, %c0_9] : memref<1x128xf32, #tpu.memory_space<vmem>>, vector<1x128xf32>
    %11 = arith.truncf %8 : vector<8x128xf32> to vector<8x128xbf16>
    %cst_10 = arith.constant dense<0.000000e+00> : vector<8x128xf32>
    %12 = tpu.matmul %11, %9, %cst_10 {dimension_numbers = #tpu.dot_dimension_numbers<[1], [0], [0], [1], [0, 0, 1, 1], [], []>} : vector<8x128xbf16>, vector<128x128xbf16>, vector<8x128xf32> -> vector<8x128xf32>
    %13 = vector.broadcast %10 : vector<1x128xf32> to vector<8x128xf32>
    %14 = arith.addf %12, %13 : vector<8x128xf32>
    %cst_11 = arith.constant 0.000000e+00 : f32
    %15 = vector.broadcast %cst_11 : f32 to vector<8x128xf32>
    %16 = arith.maximumf %14, %15 : vector<8x128xf32>
    %c0_12 = arith.constant 0 : index
    %c0_13 = arith.constant 0 : index
    %17 = vector.load %arg6[%c0_12, %c0_13] : memref<128x128xbf16, #tpu.memory_space<vmem>>, vector<128x128xbf16>
    %c0_14 = arith.constant 0 : index
    %c0_15 = arith.constant 0 : index
    %18 = vector.load %arg7[%c0_14, %c0_15] : memref<1x128xf32, #tpu.memory_space<vmem>>, vector<1x128xf32>
    %19 = arith.truncf %16 : vector<8x128xf32> to vector<8x128xbf16>
    %cst_16 = arith.constant dense<0.000000e+00> : vector<8x128xf32>
    %20 = tpu.matmul %19, %17, %cst_16 {dimension_numbers = #tpu.dot_dimension_numbers<[1], [0], [0], [1], [0, 0, 1, 1], [], []>} : vector<8x128xbf16>, vector<128x128xbf16>, vector<8x128xf32> -> vector<8x128xf32>
    %21 = vector.broadcast %18 : vector<1x128xf32> to vector<8x128xf32>
    %22 = arith.addf %20, %21 : vector<8x128xf32>
    %c0_17 = arith.constant 0 : index
    %c0_18 = arith.constant 0 : index
    %23 = vector.load %arg8[%c0_17, %c0_18] : memref<8x128xf32, #tpu.memory_space<vmem>>, vector<8x128xf32>
    tpu.vector_store %arg8[%c0_17, %c0_18], %22 {strides = array<i32>} : memref<8x128xf32, #tpu.memory_space<vmem>>, vector<8x128xf32>,
    return
  }
  func.func @transform_0(%arg0: i32) -> (i32, i32) {
    %c0_i32 = arith.constant 0 : i32
    %c0_i32_0 = arith.constant 0 : i32
    return %arg0, %c0_i32 : i32, i32
  }
  func.func @transform_1(%arg0: i32) -> (i32, i32) {
    %c0_i32 = arith.constant 0 : i32
    %c0_i32_0 = arith.constant 0 : i32
    %c0_i32_1 = arith.constant 0 : i32
    return %c0_i32, %c0_i32_0 : i32, i32
  }
  func.func @transform_2(%arg0: i32) -> (i32, i32) {
    %c0_i32 = arith.constant 0 : i32
    %c0_i32_0 = arith.constant 0 : i32
    %c0_i32_1 = arith.constant 0 : i32
    return %c0_i32, %c0_i32_0 : i32, i32
  }
  func.func @transform_3(%arg0: i32) -> (i32, i32) {
    %c0_i32 = arith.constant 0 : i32
    %c0_i32_0 = arith.constant 0 : i32
    %c0_i32_1 = arith.constant 0 : i32
    return %c0_i32, %c0_i32_0 : i32, i32
  }
  func.func @transform_4(%arg0: i32) -> (i32, i32) {
    %c0_i32 = arith.constant 0 : i32
    %c0_i32_0 = arith.constant 0 : i32
    %c0_i32_1 = arith.constant 0 : i32
    return %c0_i32, %c0_i32_0 : i32, i32
  }
  func.func @transform_5(%arg0: i32) -> (i32, i32) {
    %c0_i32 = arith.constant 0 : i32
    %c0_i32_0 = arith.constant 0 : i32
    %c0_i32_1 = arith.constant 0 : i32
    return %c0_i32, %c0_i32_0 : i32, i32
  }
  func.func @transform_6(%arg0: i32) -> (i32, i32) {
    %c0_i32 = arith.constant 0 : i32
    %c0_i32_0 = arith.constant 0 : i32
    %c0_i32_1 = arith.constant 0 : i32
    return %c0_i32, %c0_i32_0 : i32, i32
  }
  func.func @transform_7(%arg0: i32) -> (i32, i32) {
    %c0_i32 = arith.constant 0 : i32
    %c0_i32_0 = arith.constant 0 : i32
    return %arg0, %c0_i32 : i32, i32
  }
}

</mosaic_0001>

<llo_original>
// kernel: tpu_custom_call.1
$region0: #{tpu_custom_call.1}
  #allocation0 [shape = 'u32[]', space=smem, size = 0x4, offset = 0x4, fixed_abs, tag = 'smem constant byte address 0x4 - core index']
  #allocation1 [shape = 'u32[144,128]{1,0:T(1,128)}', space=vmem, size = 0x12000, scoped, tag = 'internal scratch']
  %s0 = inlined_call_operand.hbm [shape: f32[8,8], index: 0, kind: input, shape index: {}]
  %s1 = inlined_call_operand.hbm [shape: bf16[8,128], index: 1, kind: input, shape index: {}]
  %s2 = inlined_call_operand.vmem [shape: f32[1,128], index: 2, kind: input, shape index: {}]
  %s3 = inlined_call_operand.hbm [shape: bf16[128,128], index: 3, kind: input, shape index: {}]
  %s4 = inlined_call_operand.vmem [shape: f32[1,128], index: 4, kind: input, shape index: {}]
  %s5 = inlined_call_operand.hbm [shape: bf16[128,128], index: 5, kind: input, shape index: {}]
  %s6 = inlined_call_operand.vmem [shape: f32[1,128], index: 6, kind: input, shape index: {}]
  %s7 = inlined_call_operand.hbm [shape: f32[8,128], index: 7, kind: output, shape index: {}]
  %s8 = sld [smem:[#allocation0]]
  $region54: #{tpu_custom_call.1} parent=0
    _
  %s10 = ssub.s32 1, %s8
  %s11 = scalar_select 0, %s10, %s8
  $region1: #{tpu_custom_call.1} parent=0
    #allocation2 [shape = 'u8[4096]{0}', space=vmem, size = 0x1000, scoped, tag = 'input window, operand 0, single buffered']
    #allocation3 [shape = 's32[1]{0}', space=sflag, size = 0x4, scoped, tag = 'scoped memory for tpu_custom_call.1']
    #allocation4 [shape = 's32[1]{0}', space=sflag, size = 0x4, scoped, tag = 'scoped memory for tpu_custom_call.1']
    #allocation5 [shape = 'u8[2048]{0}', space=vmem, size = 0x800, scoped, tag = 'input window, operand 1, single buffered']
    #allocation6 [shape = 's32[1]{0}', space=sflag, size = 0x4, scoped, tag = 'scoped memory for tpu_custom_call.1']
    #allocation7 [shape = 'u8[32768]{0}', space=vmem, size = 0x8000, scoped, tag = 'input window, operand 3, single buffered']
    #allocation8 [shape = 'u8[32768]{0}', space=vmem, size = 0x8000, scoped, tag = 'input window, operand 5, single buffered']
    #allocation9 [shape = 's32[1]{0}', space=sflag, size = 0x4, scoped, tag = 'scoped memory for tpu_custom_call.1']
    #allocation10 [shape = 'u8[4096]{0}', space=vmem, size = 0x1000, scoped, tag = 'output window, operand 0, single buffered']
    %12 = vsyncpa [#allocation3], 0
    %13 = vsyncpa [#allocation6], 0
    %14 = vsyncpa [#allocation9], 0
    %15 = vsyncpa [#allocation4], 0
    // Predicated region
    $region2: #{tpu_custom_call.1} parent=1 // pred_check
      _
    $region3: #{tpu_custom_call.1} parent=1 // pred_check_branch
      %17 = sbr.rel (0) target = $region5
    $region4: #{tpu_custom_call.1} parent=1 // pred_region
      %s19 = ssub.s32 128, 128
      %20 = vsyncadd [#allocation3], %s19
      %s22 = sshll.u32 [#allocation2], 4
      %s23 = int_to_ptr.vmem [resolvable:$true] %s22
      %25 = dma.hbm_to_vmem [thread:$0]  %s0, 128, %s23, [#allocation3]
    $region5: #{tpu_custom_call.1} parent=1 // pred_fallthru
      _
    // Predicated region
    $region6: #{tpu_custom_call.1} parent=1 // pred_check
      _
    $region7: #{tpu_custom_call.1} parent=1 // pred_check_branch
      %27 = sbr.rel (0) target = $region9
    $region8: #{tpu_custom_call.1} parent=1 // pred_region
      %s29 = ssub.s32 64, 64
      %30 = vsyncadd [#allocation6], %s29
      %s32 = sshll.u32 [#allocation5], 4
      %s33 = int_to_ptr.vmem [resolvable:$true] %s32
      %35 = dma.hbm_to_vmem [thread:$0]  %s1, 64, %s33, [#allocation6]
    $region9: #{tpu_custom_call.1} parent=1 // pred_fallthru
      _
    // Predicated region
    $region10: #{tpu_custom_call.1} parent=1 // pred_check
      _
    $region11: #{tpu_custom_call.1} parent=1 // pred_check_branch
      %37 = sbr.rel (0) target = $region13
    $region12: #{tpu_custom_call.1} parent=1 // pred_region
      _
    $region13: #{tpu_custom_call.1} parent=1 // pred_fallthru
      _
    // Predicated region
    $region14: #{tpu_custom_call.1} parent=1 // pred_check
      _
    $region15: #{tpu_custom_call.1} parent=1 // pred_check_branch
      %39 = sbr.rel (0) target = $region17
    $region16: #{tpu_custom_call.1} parent=1 // pred_region
      %s41 = ssub.s32 1024, 1024
      %42 = vsyncadd [#allocation6], %s41
      %s43 = sshll.u32 [#allocation7], 4
      %s44 = int_to_ptr.vmem [resolvable:$true] %s43
      %49 = dma.hbm_to_vmem [thread:$0]  %s3, 1024, %s44, [#allocation6], 64, 64, 4
    $region17: #{tpu_custom_call.1} parent=1 // pred_fallthru
      _
    // Predicated region
    $region18: #{tpu_custom_call.1} parent=1 // pred_check
      _
    $region19: #{tpu_custom_call.1} parent=1 // pred_check_branch
      %51 = sbr.rel (0) target = $region21
    $region20: #{tpu_custom_call.1} parent=1 // pred_region
      _
    $region21: #{tpu_custom_call.1} parent=1 // pred_fallthru
      _
    // Predicated region
    $region22: #{tpu_custom_call.1} parent=1 // pred_check
      _
    $region23: #{tpu_custom_call.1} parent=1 // pred_check_branch
      %53 = sbr.rel (0) target = $region25
    $region24: #{tpu_custom_call.1} parent=1 // pred_region
      %s55 = ssub.s32 1024, 1024
      %56 = vsyncadd [#allocation9], %s55
      %s57 = sshll.u32 [#allocation8], 4
      %s58 = int_to_ptr.vmem [resolvable:$true] %s57
      %63 = dma.hbm_to_vmem [thread:$0]  %s5, 1024, %s58, [#allocation9], 64, 64, 4
    $region25: #{tpu_custom_call.1} parent=1 // pred_fallthru
      _
    // Predicated region
    $region26: #{tpu_custom_call.1} parent=1 // pred_check
      _
    $region27: #{tpu_custom_call.1} parent=1 // pred_check_branch
      %65 = sbr.rel (0) target = $region29
    $region28: #{tpu_custom_call.1} parent=1 // pred_region
      _
    $region29: #{tpu_custom_call.1} parent=1 // pred_fallthru
      _
    // Predicated region
    $region30: #{tpu_custom_call.1} parent=1 // pred_check
      _
    $region31: #{tpu_custom_call.1} parent=1 // pred_check_branch
      %67 = sbr.rel (0) target = $region33
    $region32: #{tpu_custom_call.1} parent=1 // pred_region
      %68 = dma.done [#allocation3], 128
    $region33: #{tpu_custom_call.1} parent=1 // pred_fallthru
      _
    // Predicated region
    $region34: #{tpu_custom_call.1} parent=1 // pred_check
      _
    $region35: #{tpu_custom_call.1} parent=1 // pred_check_branch
      %70 = sbr.rel (0) target = $region37
    $region36: #{tpu_custom_call.1} parent=1 // pred_region
      %71 = dma.done [#allocation6], 64
    $region37: #{tpu_custom_call.1} parent=1 // pred_fallthru
      _
    // Predicated region
    $region38: #{tpu_custom_call.1} parent=1 // pred_check
      _
    $region39: #{tpu_custom_call.1} parent=1 // pred_check_branch
      %73 = sbr.rel (0) target = $region41
    $region40: #{tpu_custom_call.1} parent=1 // pred_region
      %74 = dma.done [#allocation6], 1024
    $region41: #{tpu_custom_call.1} parent=1 // pred_fallthru
      _
    // Predicated region
    $region42: #{tpu_custom_call.1} parent=1 // pred_check
      _
    $region43: #{tpu_custom_call.1} parent=1 // pred_check_branch
      %76 = sbr.rel (0) target = $region45
    $region44: #{tpu_custom_call.1} parent=1 // pred_region
      %77 = dma.done [#allocation9], 1024
    $region45: #{tpu_custom_call.1} parent=1 // pred_fallthru
      _
    %v79 = vld [vmem:[#allocation2] sm:$0xff]
    %v80 = vld [vmem:[#allocation5] sm:$0xf]
    %v81 = vld [vmem:[%s2] sm:$0x1]
    %v82 = vpack.c.bf16 %v79, %v79
    %v84 = vlaneseq
    %v85 = vshrl.u32 %v84, 7
    %v86 = vsub.s32 0, %v85
    %v87 = vrot.slane %v81, %v86
    %vm89 = vcmask 64512
    %v91 = vsel %vm89, %v82, 0
    %vm93 = vcmask 1043456
    %v95 = vsel %vm93, %v80, 0
    %97 = vmatprep.subr.bf16.mxu0 0
    %98 = vmatpush1.bf16.msra.mxu0 %v95
    %99 = vmatprep.subr.bf16.mxu0 0
    %100 = vmatpush1.bf16.msra.mxu0 0
    %101 = vmatprep.subr.bf16.mxu0 0
    %102 = vmatpush1.bf16.msra.mxu0 0
    %103 = vmatprep.subr.bf16.mxu0 0
    %104 = vmatpush1.bf16.msra.mxu0 0
    %105 = vmatprep.subr.bf16.mxu0 0
    %106 = vmatpush1.bf16.msra.mxu0 0
    %107 = vmatprep.subr.bf16.mxu0 0
    %108 = vmatpush1.bf16.msra.mxu0 0
    %109 = vmatprep.subr.bf16.mxu0 0
    %110 = vmatpush1.bf16.msra.mxu0 0
    %111 = vmatprep.subr.bf16.mxu0 0
    %112 = vmatpush1.bf16.msra.mxu0 0
    %113 = vmatprep.subr.bf16.mxu0 0
    %114 = vmatpush1.bf16.msra.mxu0 0
    %115 = vmatprep.subr.bf16.mxu0 0
    %116 = vmatpush1.bf16.msra.mxu0 0
    %117 = vmatprep.subr.bf16.mxu0 0
    %118 = vmatpush1.bf16.msra.mxu0 0
    %119 = vmatprep.subr.bf16.mxu0 0
    %120 = vmatpush1.bf16.msra.mxu0 0
    %121 = vmatprep.subr.bf16.mxu0 0
    %122 = vmatpush1.bf16.msra.mxu0 0
    %123 = vmatprep.subr.bf16.mxu0 0
    %124 = vmatpush1.bf16.msra.mxu0 0
    %125 = vmatprep.subr.bf16.mxu0 0
    %126 = vmatpush1.bf16.msra.mxu0 0
    %127 = vmatprep.subr.bf16.mxu0 0
    %128 = vmatpush1.bf16.msra.mxu0 0
    %129 = vmatprep.mubr.bf16.mxu0 0
    %130 = vmatmul.mubr.bf16.gmra.mrb[0].mxu0 %v91
    %v131 = vpop.f32.mrb[0].mxu0
    %v132 = vadd.f32 %v87, %v131
    %v133 = vpop.f32.mrb[0].mxu0
    %v134 = vpop.f32.mrb[0].mxu0
    %v135 = vpop.f32.mrb[0].mxu0
    %136 = vdwg.mxu0
    %v137 = vmax.f32 %v132, 0.0
    %v138 = vld [vmem:[#allocation7] sm:$0xf]
    %v139 = vld [vmem:[#allocation7 + $0x4] sm:$0xf]
    %v140 = vld [vmem:[#allocation7 + $0x8] sm:$0xf]
    %v141 = vld [vmem:[#allocation7 + $0xc] sm:$0xf]
    %v142 = vld [vmem:[#allocation7 + $0x10] sm:$0xf]
    %v143 = vld [vmem:[#allocation7 + $0x14] sm:$0xf]
    %v144 = vld [vmem:[#allocation7 + $0x18] sm:$0xf]
    %v145 = vld [vmem:[#allocation7 + $0x1c] sm:$0xf]
    %v146 = vld [vmem:[#allocation7 + $0x20] sm:$0xf]
    %v147 = vld [vmem:[#allocation7 + $0x24] sm:$0xf]
    %v148 = vld [vmem:[#allocation7 + $0x28] sm:$0xf]
    %v149 = vld [vmem:[#allocation7 + $0x2c] sm:$0xf]
    %v150 = vld [vmem:[#allocation7 + $0x30] sm:$0xf]
    %v151 = vld [vmem:[#allocation7 + $0x34] sm:$0xf]
    %v152 = vld [vmem:[#allocation7 + $0x38] sm:$0xf]
    %v153 = vld [vmem:[#allocation7 + $0x3c] sm:$0xf]
    %v154 = vld [vmem:[%s4] sm:$0x1]
    %v155 = vpack.c.bf16 %v137, %v137
    %v157 = vlaneseq
    %v158 = vshrl.u32 %v157, 7
    %v159 = vsub.s32 0, %v158
    %v160 = vrot.slane %v154, %v159
    %v178 = vunpack.c.l.b16 %v138
    %v179 = vunpack.c.l.b16 %v139
    %v180 = vunpack.c.l.b16 %v140
    %v181 = vunpack.c.l.b16 %v141
    %v182 = vunpack.c.l.b16 %v142
    %v183 = vunpack.c.l.b16 %v143
    %v184 = vunpack.c.l.b16 %v144
    %v185 = vunpack.c.l.b16 %v145
    %v186 = vunpack.c.l.b16 %v146
    %v187 = vunpack.c.l.b16 %v147
    %v188 = vunpack.c.l.b16 %v148
    %v189 = vunpack.c.l.b16 %v149
    %v190 = vunpack.c.l.b16 %v150
    %v191 = vunpack.c.l.b16 %v151
    %v192 = vunpack.c.l.b16 %v152
    %v193 = vunpack.c.l.b16 %v153
    %v194 = vpack.c.b16 %v179, %v178
    %v195 = vpack.c.b16 %v181, %v180
    %v196 = vpack.c.b16 %v183, %v182
    %v197 = vpack.c.b16 %v185, %v184
    %v198 = vpack.c.b16 %v187, %v186
    %v199 = vpack.c.b16 %v189, %v188
    %v200 = vpack.c.b16 %v191, %v190
    %v201 = vpack.c.b16 %v193, %v192
    %210 = vmatprep.subr.bf16.mxu0 0
    %211 = vmatpush1.bf16.msra.mxu0 %v194
    %212 = vmatprep.subr.bf16.mxu0 0
    %213 = vmatpush1.bf16.msra.mxu0 %v195
    %214 = vmatprep.subr.bf16.mxu0 0
    %215 = vmatpush1.bf16.msra.mxu0 %v196
    %216 = vmatprep.subr.bf16.mxu0 0
    %217 = vmatpush1.bf16.msra.mxu0 %v197
    %218 = vmatprep.subr.bf16.mxu0 0
    %219 = vmatpush1.bf16.msra.mxu0 %v198
    %220 = vmatprep.subr.bf16.mxu0 0
    %221 = vmatpush1.bf16.msra.mxu0 %v199
    %222 = vmatprep.subr.bf16.mxu0 0
    %223 = vmatpush1.bf16.msra.mxu0 %v200
    %224 = vmatprep.subr.bf16.mxu0 0
    %225 = vmatpush1.bf16.msra.mxu0 %v201
    %226 = vmatprep.subr.bf16.mxu0 0
    %227 = vmatpush1.bf16.msra.mxu0 0
    %228 = vmatprep.subr.bf16.mxu0 0
    %229 = vmatpush1.bf16.msra.mxu0 0
    %230 = vmatprep.subr.bf16.mxu0 0
    %231 = vmatpush1.bf16.msra.mxu0 0
    %232 = vmatprep.subr.bf16.mxu0 0
    %233 = vmatpush1.bf16.msra.mxu0 0
    %234 = vmatprep.subr.bf16.mxu0 0
    %235 = vmatpush1.bf16.msra.mxu0 0
    %236 = vmatprep.subr.bf16.mxu0 0
    %237 = vmatpush1.bf16.msra.mxu0 0
    %238 = vmatprep.subr.bf16.mxu0 0
    %239 = vmatpush1.bf16.msra.mxu0 0
    %240 = vmatprep.subr.bf16.mxu0 0
    %241 = vmatpush1.bf16.msra.mxu0 0
    %242 = vmatprep.mubr.bf16.mxu0 0
    %243 = vmatmul.mubr.bf16.gmra.mrb[0].mxu0 %v155
    %v244 = vpop.f32.mrb[0].mxu0
    %v245 = vadd.f32 %v160, %v244
    %v246 = vpop.f32.mrb[0].mxu0
    %v247 = vpop.f32.mrb[0].mxu0
    %v248 = vpop.f32.mrb[0].mxu0
    %249 = vdwg.mxu0
    %v250 = vmax.f32 %v245, 0.0
    %v251 = vld [vmem:[#allocation8] sm:$0xf]
    %v252 = vld [vmem:[#allocation8 + $0x4] sm:$0xf]
    %v253 = vld [vmem:[#allocation8 + $0x8] sm:$0xf]
    %v254 = vld [vmem:[#allocation8 + $0xc] sm:$0xf]
    %v255 = vld [vmem:[#allocation8 + $0x10] sm:$0xf]
    %v256 = vld [vmem:[#allocation8 + $0x14] sm:$0xf]
    %v257 = vld [vmem:[#allocation8 + $0x18] sm:$0xf]
    %v258 = vld [vmem:[#allocation8 + $0x1c] sm:$0xf]
    %v259 = vld [vmem:[#allocation8 + $0x20] sm:$0xf]
    %v260 = vld [vmem:[#allocation8 + $0x24] sm:$0xf]
    %v261 = vld [vmem:[#allocation8 + $0x28] sm:$0xf]
    %v262 = vld [vmem:[#allocation8 + $0x2c] sm:$0xf]
    %v263 = vld [vmem:[#allocation8 + $0x30] sm:$0xf]
    %v264 = vld [vmem:[#allocation8 + $0x34] sm:$0xf]
    %v265 = vld [vmem:[#allocation8 + $0x38] sm:$0xf]
    %v266 = vld [vmem:[#allocation8 + $0x3c] sm:$0xf]
    %v267 = vld [vmem:[%s6] sm:$0x1]
    %v268 = vpack.c.bf16 %v250, %v250
    %v270 = vlaneseq
    %v271 = vshrl.u32 %v270, 7
    %v272 = vsub.s32 0, %v271
    %v273 = vrot.slane %v267, %v272
    %v291 = vunpack.c.l.b16 %v251
    %v292 = vunpack.c.l.b16 %v252
    %v293 = vunpack.c.l.b16 %v253
    %v294 = vunpack.c.l.b16 %v254
    %v295 = vunpack.c.l.b16 %v255
    %v296 = vunpack.c.l.b16 %v256
    %v297 = vunpack.c.l.b16 %v257
    %v298 = vunpack.c.l.b16 %v258
    %v299 = vunpack.c.l.b16 %v259
    %v300 = vunpack.c.l.b16 %v260
    %v301 = vunpack.c.l.b16 %v261
    %v302 = vunpack.c.l.b16 %v262
    %v303 = vunpack.c.l.b16 %v263
    %v304 = vunpack.c.l.b16 %v264
    %v305 = vunpack.c.l.b16 %v265
    %v306 = vunpack.c.l.b16 %v266
    %v307 = vpack.c.b16 %v292, %v291
    %v308 = vpack.c.b16 %v294, %v293
    %v309 = vpack.c.b16 %v296, %v295
    %v310 = vpack.c.b16 %v298, %v297
    %v311 = vpack.c.b16 %v300, %v299
    %v312 = vpack.c.b16 %v302, %v301
    %v313 = vpack.c.b16 %v304, %v303
    %v314 = vpack.c.b16 %v306, %v305
    %323 = vmatprep.subr.bf16.mxu0 0
    %324 = vmatpush1.bf16.msra.mxu0 %v307
    %325 = vmatprep.subr.bf16.mxu0 0
    %326 = vmatpush1.bf16.msra.mxu0 %v308
    %327 = vmatprep.subr.bf16.mxu0 0
    %328 = vmatpush1.bf16.msra.mxu0 %v309
    %329 = vmatprep.subr.bf16.mxu0 0
    %330 = vmatpush1.bf16.msra.mxu0 %v310
    %331 = vmatprep.subr.bf16.mxu0 0
    %332 = vmatpush1.bf16.msra.mxu0 %v311
    %333 = vmatprep.subr.bf16.mxu0 0
    %334 = vmatpush1.bf16.msra.mxu0 %v312
    %335 = vmatprep.subr.bf16.mxu0 0
    %336 = vmatpush1.bf16.msra.mxu0 %v313
    %337 = vmatprep.subr.bf16.mxu0 0
    %338 = vmatpush1.bf16.msra.mxu0 %v314
    %339 = vmatprep.subr.bf16.mxu0 0
    %340 = vmatpush1.bf16.msra.mxu0 0
    %341 = vmatprep.subr.bf16.mxu0 0
    %342 = vmatpush1.bf16.msra.mxu0 0
    %343 = vmatprep.subr.bf16.mxu0 0
    %344 = vmatpush1.bf16.msra.mxu0 0
    %345 = vmatprep.subr.bf16.mxu0 0
    %346 = vmatpush1.bf16.msra.mxu0 0
    %347 = vmatprep.subr.bf16.mxu0 0
    %348 = vmatpush1.bf16.msra.mxu0 0
    %349 = vmatprep.subr.bf16.mxu0 0
    %350 = vmatpush1.bf16.msra.mxu0 0
    %351 = vmatprep.subr.bf16.mxu0 0
    %352 = vmatpush1.bf16.msra.mxu0 0
    %353 = vmatprep.subr.bf16.mxu0 0
    %354 = vmatpush1.bf16.msra.mxu0 0
    %355 = vmatprep.mubr.bf16.mxu0 0
    %356 = vmatmul.mubr.bf16.gmra.mrb[0].mxu0 %v268
    %v357 = vpop.f32.mrb[0].mxu0
    %v358 = vadd.f32 %v273, %v357
    %v359 = vpop.f32.mrb[0].mxu0
    %v360 = vpop.f32.mrb[0].mxu0
    %v361 = vpop.f32.mrb[0].mxu0
    %362 = vdwg.mxu0
    %363 = vst [vmem:[#allocation10] sm:$0xff] %v358
    // Predicated region
    $region46: #{tpu_custom_call.1} parent=1 // pred_check
      _
    $region47: #{tpu_custom_call.1} parent=1 // pred_check_branch
      %365 = sbr.rel (0) target = $region49
    $region48: #{tpu_custom_call.1} parent=1 // pred_region
      %s367 = ssub.s32 128, 128
      %368 = vsyncadd [#allocation4], %s367
      %s370 = sshll.u32 [#allocation10], 4
      %s371 = int_to_ptr.vmem [resolvable:$true] %s370
      %373 = dma.vmem_to_hbm [thread:$0]  %s371, 128, %s7, [#allocation4]
    $region49: #{tpu_custom_call.1} parent=1 // pred_fallthru
      _
    // Predicated region
    $region50: #{tpu_custom_call.1} parent=1 // pred_check
      _
    $region51: #{tpu_custom_call.1} parent=1 // pred_check_branch
      %375 = sbr.rel (0) target = $region53
    $region52: #{tpu_custom_call.1} parent=1 // pred_region
      %376 = dma.done [#allocation4], 128
    $region53: #{tpu_custom_call.1} parent=1 // pred_fallthru
      _
    %377 = vsyncpa [#allocation3], 1
    %378 = vsyncpa [#allocation6], 1
    %379 = vsyncpa [#allocation9], 1
    %380 = vsyncpa [#allocation4], 1

</llo_original>
